<compile_context>
chip_gen: v5e
topology: v5e:2x2
jax: 0.10.0
libtpu: 0.0.40
codegen_flags: <defaults>
</compile_context>

<pallas_src>
import jax
import jax.numpy as jnp
from jax.experimental import pallas as pl
from jax.experimental.pallas import tpu as pltpu

LANE = 128  # everything (features, hiddens, value head) is padded to this


def _round_up(x, m):
    return (x + m - 1) // m * m


def _mlp_kernel(x_ref, w1_ref, b1_ref, w2_ref, b2_ref, w3_ref, b3_ref, o_ref):
    # Fused 3-layer MLP on one (tile_b, 128) batch tile.
    # Matmul inputs are bf16 (native MXU format), accumulation is f32,
    # bias-add / ReLU are f32 VPU work (free in otherwise-idle VALU slots).
    x = x_ref[...].astype(jnp.bfloat16)

    h1 = jnp.dot(x, w1_ref[...], preferred_element_type=jnp.float32) + b1_ref[...]
    h1 = jnp.maximum(h1, 0.0).astype(jnp.bfloat16)

    h2 = jnp.dot(h1, w2_ref[...], preferred_element_type=jnp.float32) + b2_ref[...]
    h2 = jnp.maximum(h2, 0.0).astype(jnp.bfloat16)

    out = jnp.dot(h2, w3_ref[...], preferred_element_type=jnp.float32) + b3_ref[...]
    o_ref[...] = out.astype(o_ref.dtype)  # lane-dense (tile_b, 128) store


def init_params(seed, state_size=64, value_size=2):
    """Deterministic init mimicking nn.Linear's U(-1/sqrt(fan_in), 1/sqrt(fan_in)).
    Weights stored already transposed to (in, out)."""
    key = jax.random.PRNGKey(seed)
    dims = [(state_size, 128), (128, 64), (64, value_size)]
    params = {}
    for idx, (fan_in, fan_out) in enumerate(dims, start=1):
        key, kw, kb = jax.random.split(key, 3)
        bound = 1.0 / jnp.sqrt(jnp.float32(fan_in))
        params[f"w{idx}"] = jax.random.uniform(
            kw, (fan_in, fan_out), jnp.float32, minval=-bound, maxval=bound)
        params[f"b{idx}"] = jax.random.uniform(
            kb, (1, fan_out), jnp.float32, minval=-bound, maxval=bound)
    return params


def pad_params_for_kernel(params):
    """Zero-pad all weights to (128,128) and biases to (1,128); weights -> bf16.

    Zero-padding is exact: padded input columns hit zero weight rows, padded
    hidden columns get bias 0 -> ReLU keeps them 0 -> zero weight rows in the
    next layer, and padded output columns are sliced off in the wrapper.
    """
    def pad2(a, rows, cols):
        out = jnp.zeros((rows, cols), a.dtype)
        return out.at[:a.shape[0], :a.shape[1]].set(a)

    kparams = {}
    for idx in (1, 2, 3):
        kparams[f"w{idx}"] = pad2(params[f"w{idx}"], LANE, LANE).astype(jnp.bfloat16)
        kparams[f"b{idx}"] = pad2(params[f"b{idx}"], 1, LANE)  # stays f32
    return kparams


def network_forward(state, kparams, *, value_size=2, tile_b=None):
    """state: (B, state_size<=128) float32.  kparams: output of pad_params_for_kernel."""
    B, S = state.shape
    assert S <= LANE, "state_size must be <= 128 for this kernel"

    # Batch tiling: multiple of 8 sublanes, capped at 512 rows so large batches
    # produce >= 2 parallel grid steps (v7x two-TensorCore sharding) while each
    # tile stays a few hundred KiB of VMEM.
    if tile_b is None:
        tile_b = min(512, _round_up(max(B, 8), 8))
    tile_b = max(8, _round_up(tile_b, 8))

    n_tiles = pl.cdiv(B, tile_b)
    b_pad = n_tiles * tile_b

    # Zero-pad batch (remainder rows) and feature dim in one shot.
    state_p = jnp.zeros((b_pad, LANE), state.dtype).at[:B, :S].set(state)

    rep_w = lambda: pl.BlockSpec((LANE, LANE), lambda i: (0, 0))
    rep_b = lambda: pl.BlockSpec((1, LANE), lambda i: (0, 0))

    flops = 2 * b_pad * 3 * LANE * LANE
    bytes_accessed = (2 * b_pad * LANE * 4          # input + output tiles (f32)
                      + 3 * (LANE * LANE * 2)       # bf16 weights
                      + 3 * (LANE * 4))             # f32 biases

    out_pad = pl.pallas_call(
        _mlp_kernel,
        out_shape=jax.ShapeDtypeStruct((b_pad, LANE), jnp.float32),
        grid_spec=pltpu.PrefetchScalarGridSpec(
            num_scalar_prefetch=0,
            grid=(n_tiles,),
            in_specs=[
                pl.BlockSpec((tile_b, LANE), lambda i: (i, 0)),  # state tile
                rep_w(), rep_b(),                                # W1, b1
                rep_w(), rep_b(),                                # W2, b2
                rep_w(), rep_b(),                                # W3, b3
            ],
            out_specs=pl.BlockSpec((tile_b, LANE), lambda i: (i, 0)),
        ),
        compiler_params=pltpu.CompilerParams(
            dimension_semantics=("parallel",),
            vmem_limit_bytes=32 * 1024 * 1024,
        ),
        cost_estimate=pl.CostEstimate(
            flops=flops, transcendentals=0, bytes_accessed=bytes_accessed),
    )(
        state_p,
        kparams["w1"], kparams["b1"],
        kparams["w2"], kparams["b2"],
        kparams["w3"], kparams["b3"],
    )

    # Drop batch padding and the lane padding of the value head.
    return out_pad[:B, :value_size]


def _reference_forward(state, params):
    h1 = jnp.maximum(state @ params["w1"] + params["b1"], 0.0)
    h2 = jnp.maximum(h1 @ params["w2"] + params["b2"], 0.0)
    return h2 @ params["w3"] + params["b3"]


if __name__ == "__main__":
    STATE_SIZE = 64
    VALUE_SIZE = 2
    BATCH = 20  # deliberately not a multiple of the 8-row tile to exercise cdiv/padding

    params = init_params(seed=0, state_size=STATE_SIZE, value_size=VALUE_SIZE)
    kparams = pad_params_for_kernel(params)

    key = jax.random.PRNGKey(0)
    state = jax.random.normal(key, (BATCH, STATE_SIZE), dtype=jnp.float32)

    out = network_forward(state, kparams, value_size=VALUE_SIZE)
    out = jax.block_until_ready(out)

    ref = _reference_forward(state, params)  # pure f32 reference (module semantics)
    assert out.shape == (BATCH, VALUE_SIZE), out.shape
    # bf16 MXU inputs with f32 accumulation -> ~1e-2-level tolerance vs f32 ref.
    assert jnp.allclose(out, ref, atol=5e-2, rtol=5e-2), "mismatch vs pure-JAX reference"

    print("KERNEL_OK")
</pallas_src>

<mosaic_0001>
module attributes {stable_mosaic.version = 11 : i64} {
  func.func @_mlp_kernel(%arg0: i32, %arg1: memref<24x128xf32, #tpu.memory_space<vmem>>, %arg2: memref<128x128xbf16, #tpu.memory_space<vmem>>, %arg3: memref<1x128xf32, #tpu.memory_space<vmem>>, %arg4: memref<128x128xbf16, #tpu.memory_space<vmem>>, %arg5: memref<1x128xf32, #tpu.memory_space<vmem>>, %arg6: memref<128x128xbf16, #tpu.memory_space<vmem>>, %arg7: memref<1x128xf32, #tpu.memory_space<vmem>>, %arg8: memref<24x128xf32, #tpu.memory_space<vmem>>) attributes {dimension_semantics = [#tpu.dimension_semantics<parallel>], iteration_bounds = array<i64: 1>, scalar_prefetch = 0 : i64, scratch_operands = 0 : i64, tpu.core_type = #tpu.core_type<tc>, window_params = [{transform_indices = @transform_0, window_bounds = array<i64: 24, 128>}, {pipeline_mode = #tpu.pipeline_mode<synchronous>, transform_indices = @transform_1, window_bounds = array<i64: 128, 128>}, {pipeline_mode = #tpu.pipeline_mode<synchronous>, transform_indices = @transform_2, window_bounds = array<i64: 1, 128>}, {pipeline_mode = #tpu.pipeline_mode<synchronous>, transform_indices = @transform_3, window_bounds = array<i64: 128, 128>}, {pipeline_mode = #tpu.pipeline_mode<synchronous>, transform_indices = @transform_4, window_bounds = array<i64: 1, 128>}, {pipeline_mode = #tpu.pipeline_mode<synchronous>, transform_indices = @transform_5, window_bounds = array<i64: 128, 128>}, {pipeline_mode = #tpu.pipeline_mode<synchronous>, transform_indices = @transform_6, window_bounds = array<i64: 1, 128>}, {transform_indices = @transform_7, window_bounds = array<i64: 24, 128>}]} {
    %c0 = arith.constant 0 : index
    %c0_0 = arith.constant 0 : index
    %0 = vector.load %arg1[%c0, %c0_0] : memref<24x128xf32, #tpu.memory_space<vmem>>, vector<24x128xf32>
    %1 = arith.truncf %0 : vector<24x128xf32> to vector<24x128xbf16>
    %c0_1 = arith.constant 0 : index
    %c0_2 = arith.constant 0 : index
    %2 = vector.load %arg2[%c0_1, %c0_2] : memref<128x128xbf16, #tpu.memory_space<vmem>>, vector<128x128xbf16>
    %cst = arith.constant dense<0.000000e+00> : vector<24x128xf32>
    %3 = tpu.matmul %1, %2, %cst {dimension_numbers = #tpu.dot_dimension_numbers<[1], [0], [0], [1], [0, 0, 1, 1], [], []>} : vector<24x128xbf16>, vector<128x128xbf16>, vector<24x128xf32> -> vector<24x128xf32>
    %c0_3 = arith.constant 0 : index
    %c0_4 = arith.constant 0 : index
    %4 = vector.load %arg3[%c0_3, %c0_4] : memref<1x128xf32, #tpu.memory_space<vmem>>, vector<1x128xf32>
    %5 = vector.broadcast %4 : vector<1x128xf32> to vector<24x128xf32>
    %6 = arith.addf %3, %5 : vector<24x128xf32>
    %cst_5 = arith.constant 0.000000e+00 : f32
    %7 = vector.broadcast %cst_5 : f32 to vector<24x128xf32>
    %8 = arith.maximumf %6, %7 : vector<24x128xf32>
    %9 = arith.truncf %8 : vector<24x128xf32> to vector<24x128xbf16>
    %c0_6 = arith.constant 0 : index
    %c0_7 = arith.constant 0 : index
    %10 = vector.load %arg4[%c0_6, %c0_7] : memref<128x128xbf16, #tpu.memory_space<vmem>>, vector<128x128xbf16>
    %cst_8 = arith.constant dense<0.000000e+00> : vector<24x128xf32>
    %11 = tpu.matmul %9, %10, %cst_8 {dimension_numbers = #tpu.dot_dimension_numbers<[1], [0], [0], [1], [0, 0, 1, 1], [], []>} : vector<24x128xbf16>, vector<128x128xbf16>, vector<24x128xf32> -> vector<24x128xf32>
    %c0_9 = arith.constant 0 : index
    %c0_10 = arith.constant 0 : index
    %12 = vector.load %arg5[%c0_9, %c0_10] : memref<1x128xf32, #tpu.memory_space<vmem>>, vector<1x128xf32>
    %13 = vector.broadcast %12 : vector<1x128xf32> to vector<24x128xf32>
    %14 = arith.addf %11, %13 : vector<24x128xf32>
    %cst_11 = arith.constant 0.000000e+00 : f32
    %15 = vector.broadcast %cst_11 : f32 to vector<24x128xf32>
    %16 = arith.maximumf %14, %15 : vector<24x128xf32>
    %17 = arith.truncf %16 : vector<24x128xf32> to vector<24x128xbf16>
    %c0_12 = arith.constant 0 : index
    %c0_13 = arith.constant 0 : index
    %18 = vector.load %arg6[%c0_12, %c0_13] : memref<128x128xbf16, #tpu.memory_space<vmem>>, vector<128x128xbf16>
    %cst_14 = arith.constant dense<0.000000e+00> : vector<24x128xf32>
    %19 = tpu.matmul %17, %18, %cst_14 {dimension_numbers = #tpu.dot_dimension_numbers<[1], [0], [0], [1], [0, 0, 1, 1], [], []>} : vector<24x128xbf16>, vector<128x128xbf16>, vector<24x128xf32> -> vector<24x128xf32>
    %c0_15 = arith.constant 0 : index
    %c0_16 = arith.constant 0 : index
    %20 = vector.load %arg7[%c0_15, %c0_16] : memref<1x128xf32, #tpu.memory_space<vmem>>, vector<1x128xf32>
    %21 = vector.broadcast %20 : vector<1x128xf32> to vector<24x128xf32>
    %22 = arith.addf %19, %21 : vector<24x128xf32>
    %c0_17 = arith.constant 0 : index
    %c0_18 = arith.constant 0 : index
    %23 = vector.load %arg8[%c0_17, %c0_18] : memref<24x128xf32, #tpu.memory_space<vmem>>, vector<24x128xf32>
    tpu.vector_store %arg8[%c0_17, %c0_18], %22 {strides = array<i32>} : memref<24x128xf32, #tpu.memory_space<vmem>>, vector<24x128xf32>,
    return
  }
  func.func @transform_0(%arg0: i32) -> (i32, i32) {
    %c0_i32 = arith.constant 0 : i32
    %c0_i32_0 = arith.constant 0 : i32
    return %arg0, %c0_i32 : i32, i32
  }
  func.func @transform_1(%arg0: i32) -> (i32, i32) {
    %c0_i32 = arith.constant 0 : i32
    %c0_i32_0 = arith.constant 0 : i32
    %c0_i32_1 = arith.constant 0 : i32
    return %c0_i32, %c0_i32_0 : i32, i32
  }
  func.func @transform_2(%arg0: i32) -> (i32, i32) {
    %c0_i32 = arith.constant 0 : i32
    %c0_i32_0 = arith.constant 0 : i32
    %c0_i32_1 = arith.constant 0 : i32
    return %c0_i32, %c0_i32_0 : i32, i32
  }
  func.func @transform_3(%arg0: i32) -> (i32, i32) {
    %c0_i32 = arith.constant 0 : i32
    %c0_i32_0 = arith.constant 0 : i32
    %c0_i32_1 = arith.constant 0 : i32
    return %c0_i32, %c0_i32_0 : i32, i32
  }
  func.func @transform_4(%arg0: i32) -> (i32, i32) {
    %c0_i32 = arith.constant 0 : i32
    %c0_i32_0 = arith.constant 0 : i32
    %c0_i32_1 = arith.constant 0 : i32
    return %c0_i32, %c0_i32_0 : i32, i32
  }
  func.func @transform_5(%arg0: i32) -> (i32, i32) {
    %c0_i32 = arith.constant 0 : i32
    %c0_i32_0 = arith.constant 0 : i32
    %c0_i32_1 = arith.constant 0 : i32
    return %c0_i32, %c0_i32_0 : i32, i32
  }
  func.func @transform_6(%arg0: i32) -> (i32, i32) {
    %c0_i32 = arith.constant 0 : i32
    %c0_i32_0 = arith.constant 0 : i32
    %c0_i32_1 = arith.constant 0 : i32
    return %c0_i32, %c0_i32_0 : i32, i32
  }
  func.func @transform_7(%arg0: i32) -> (i32, i32) {
    %c0_i32 = arith.constant 0 : i32
    %c0_i32_0 = arith.constant 0 : i32
    return %arg0, %c0_i32 : i32, i32
  }
}

</mosaic_0001>

<llo_original>
// kernel: tpu_custom_call.1
$region0: #{tpu_custom_call.1}
  #allocation0 [shape = 'u32[]', space=smem, size = 0x4, offset = 0x4, fixed_abs, tag = 'smem constant byte address 0x4 - core index']
  #allocation1 [shape = 'u32[72,128]{1,0:T(1,128)}', space=vmem, size = 0x9000, scoped, tag = 'internal scratch']
  %s0 = inlined_call_operand.hbm [shape: f32[24,128], index: 0, kind: input, shape index: {}]
  %s1 = inlined_call_operand.hbm [shape: bf16[128,128], index: 1, kind: input, shape index: {}]
  %s2 = inlined_call_operand.vmem [shape: f32[1,128], index: 2, kind: input, shape index: {}]
  %s3 = inlined_call_operand.hbm [shape: bf16[128,128], index: 3, kind: input, shape index: {}]
  %s4 = inlined_call_operand.vmem [shape: f32[1,128], index: 4, kind: input, shape index: {}]
  %s5 = inlined_call_operand.hbm [shape: bf16[128,128], index: 5, kind: input, shape index: {}]
  %s6 = inlined_call_operand.vmem [shape: f32[1,128], index: 6, kind: input, shape index: {}]
  %s7 = inlined_call_operand.hbm [shape: f32[24,128], index: 7, kind: output, shape index: {}]
  %s8 = sld [smem:[#allocation0]]
  $region54: #{tpu_custom_call.1} parent=0
    _
  %s10 = ssub.s32 1, %s8
  %s11 = scalar_select 0, %s10, %s8
  $region1: #{tpu_custom_call.1} parent=0
    #allocation2 [shape = 'u8[12288]{0}', space=vmem, size = 0x3000, scoped, tag = 'input window, operand 0, single buffered']
    #allocation3 [shape = 's32[1]{0}', space=sflag, size = 0x4, scoped, tag = 'scoped memory for tpu_custom_call.1']
    #allocation4 [shape = 's32[1]{0}', space=sflag, size = 0x4, scoped, tag = 'scoped memory for tpu_custom_call.1']
    #allocation5 [shape = 'u8[32768]{0}', space=vmem, size = 0x8000, scoped, tag = 'input window, operand 1, single buffered']
    #allocation6 [shape = 's32[1]{0}', space=sflag, size = 0x4, scoped, tag = 'scoped memory for tpu_custom_call.1']
    #allocation7 [shape = 'u8[32768]{0}', space=vmem, size = 0x8000, scoped, tag = 'input window, operand 3, single buffered']
    #allocation8 [shape = 'u8[32768]{0}', space=vmem, size = 0x8000, scoped, tag = 'input window, operand 5, single buffered']
    #allocation9 [shape = 's32[1]{0}', space=sflag, size = 0x4, scoped, tag = 'scoped memory for tpu_custom_call.1']
    #allocation10 [shape = 'u8[12288]{0}', space=vmem, size = 0x3000, scoped, tag = 'output window, operand 0, single buffered']
    %12 = vsyncpa [#allocation3], 0
    %13 = vsyncpa [#allocation6], 0
    %14 = vsyncpa [#allocation9], 0
    %15 = vsyncpa [#allocation4], 0
    // Predicated region
    $region2: #{tpu_custom_call.1} parent=1 // pred_check
      _
    $region3: #{tpu_custom_call.1} parent=1 // pred_check_branch
      %17 = sbr.rel (0) target = $region5
    $region4: #{tpu_custom_call.1} parent=1 // pred_region
      %19 = vsyncadd [#allocation3], 0
      %s20 = sshll.u32 %s0, 4
      %s21 = int_to_ptr.hbm [resolvable:$true] %s20
      %s22 = sshll.u32 [#allocation2], 4
      %s23 = int_to_ptr.vmem [resolvable:$true] %s22
      %28 = dma.hbm_to_vmem [thread:$0]  %s21, 384, %s23, [#allocation3], 128, 128, 8
    $region5: #{tpu_custom_call.1} parent=1 // pred_fallthru
      _
    // Predicated region
    $region6: #{tpu_custom_call.1} parent=1 // pred_check
      _
    $region7: #{tpu_custom_call.1} parent=1 // pred_check_branch
      %30 = sbr.rel (0) target = $region9
    $region8: #{tpu_custom_call.1} parent=1 // pred_region
      %32 = vsyncadd [#allocation6], 0
      %s33 = sshll.u32 %s1, 4
      %s34 = int_to_ptr.hbm [resolvable:$true] %s33
      %s35 = sshll.u32 [#allocation5], 4
      %s36 = int_to_ptr.vmem [resolvable:$true] %s35
      %41 = dma.hbm_to_vmem [thread:$0]  %s34, 1024, %s36, [#allocation6], 64, 64, 4
    $region9: #{tpu_custom_call.1} parent=1 // pred_fallthru
      _
    // Predicated region
    $region10: #{tpu_custom_call.1} parent=1 // pred_check
      _
    $region11: #{tpu_custom_call.1} parent=1 // pred_check_branch
      %43 = sbr.rel (0) target = $region13
    $region12: #{tpu_custom_call.1} parent=1 // pred_region
      _
    $region13: #{tpu_custom_call.1} parent=1 // pred_fallthru
      _
    // Predicated region
    $region14: #{tpu_custom_call.1} parent=1 // pred_check
      _
    $region15: #{tpu_custom_call.1} parent=1 // pred_check_branch
      %45 = sbr.rel (0) target = $region17
    $region16: #{tpu_custom_call.1} parent=1 // pred_region
      %47 = vsyncadd [#allocation6], 0
      %s48 = sshll.u32 %s3, 4
      %s49 = int_to_ptr.hbm [resolvable:$true] %s48
      %s50 = sshll.u32 [#allocation7], 4
      %s51 = int_to_ptr.vmem [resolvable:$true] %s50
      %56 = dma.hbm_to_vmem [thread:$0]  %s49, 1024, %s51, [#allocation6], 64, 64, 4
    $region17: #{tpu_custom_call.1} parent=1 // pred_fallthru
      _
    // Predicated region
    $region18: #{tpu_custom_call.1} parent=1 // pred_check
      _
    $region19: #{tpu_custom_call.1} parent=1 // pred_check_branch
      %58 = sbr.rel (0) target = $region21
    $region20: #{tpu_custom_call.1} parent=1 // pred_region
      _
    $region21: #{tpu_custom_call.1} parent=1 // pred_fallthru
      _
    // Predicated region
    $region22: #{tpu_custom_call.1} parent=1 // pred_check
      _
    $region23: #{tpu_custom_call.1} parent=1 // pred_check_branch
      %60 = sbr.rel (0) target = $region25
    $region24: #{tpu_custom_call.1} parent=1 // pred_region
      %62 = vsyncadd [#allocation9], 0
      %s63 = sshll.u32 %s5, 4
      %s64 = int_to_ptr.hbm [resolvable:$true] %s63
      %s65 = sshll.u32 [#allocation8], 4
      %s66 = int_to_ptr.vmem [resolvable:$true] %s65
      %71 = dma.hbm_to_vmem [thread:$0]  %s64, 1024, %s66, [#allocation9], 64, 64, 4
    $region25: #{tpu_custom_call.1} parent=1 // pred_fallthru
      _
    // Predicated region
    $region26: #{tpu_custom_call.1} parent=1 // pred_check
      _
    $region27: #{tpu_custom_call.1} parent=1 // pred_check_branch
      %73 = sbr.rel (0) target = $region29
    $region28: #{tpu_custom_call.1} parent=1 // pred_region
      _
    $region29: #{tpu_custom_call.1} parent=1 // pred_fallthru
      _
    // Predicated region
    $region30: #{tpu_custom_call.1} parent=1 // pred_check
      _
    $region31: #{tpu_custom_call.1} parent=1 // pred_check_branch
      %75 = sbr.rel (0) target = $region33
    $region32: #{tpu_custom_call.1} parent=1 // pred_region
      %77 = dma.done [#allocation3], 384
    $region33: #{tpu_custom_call.1} parent=1 // pred_fallthru
      _
    // Predicated region
    $region34: #{tpu_custom_call.1} parent=1 // pred_check
      _
    $region35: #{tpu_custom_call.1} parent=1 // pred_check_branch
      %79 = sbr.rel (0) target = $region37
    $region36: #{tpu_custom_call.1} parent=1 // pred_region
      %81 = dma.done [#allocation6], 1024
    $region37: #{tpu_custom_call.1} parent=1 // pred_fallthru
      _
    // Predicated region
    $region38: #{tpu_custom_call.1} parent=1 // pred_check
      _
    $region39: #{tpu_custom_call.1} parent=1 // pred_check_branch
      %83 = sbr.rel (0) target = $region41
    $region40: #{tpu_custom_call.1} parent=1 // pred_region
      %85 = dma.done [#allocation6], 1024
    $region41: #{tpu_custom_call.1} parent=1 // pred_fallthru
      _
    // Predicated region
    $region42: #{tpu_custom_call.1} parent=1 // pred_check
      _
    $region43: #{tpu_custom_call.1} parent=1 // pred_check_branch
      %87 = sbr.rel (0) target = $region45
    $region44: #{tpu_custom_call.1} parent=1 // pred_region
      %89 = dma.done [#allocation9], 1024
    $region45: #{tpu_custom_call.1} parent=1 // pred_fallthru
      _
    %v90 = vld [vmem:[#allocation2] sm:$0xff]
    %v91 = vld [vmem:[#allocation2 + $0x8] sm:$0xff]
    %v92 = vld [vmem:[#allocation2 + $0x10] sm:$0xff]
    %v93 = vpack.c.bf16 %v91, %v90
    %v94 = vpack.c.bf16 %v92, %v92
    %v95 = vld [vmem:[#allocation5] sm:$0xf]
    %v96 = vld [vmem:[#allocation5 + $0x4] sm:$0xf]
    %v97 = vld [vmem:[#allocation5 + $0x8] sm:$0xf]
    %v98 = vld [vmem:[#allocation5 + $0xc] sm:$0xf]
    %v99 = vld [vmem:[#allocation5 + $0x10] sm:$0xf]
    %v100 = vld [vmem:[#allocation5 + $0x14] sm:$0xf]
    %v101 = vld [vmem:[#allocation5 + $0x18] sm:$0xf]
    %v102 = vld [vmem:[#allocation5 + $0x1c] sm:$0xf]
    %v103 = vld [vmem:[#allocation5 + $0x20] sm:$0xf]
    %v104 = vld [vmem:[#allocation5 + $0x24] sm:$0xf]
    %v105 = vld [vmem:[#allocation5 + $0x28] sm:$0xf]
    %v106 = vld [vmem:[#allocation5 + $0x2c] sm:$0xf]
    %v107 = vld [vmem:[#allocation5 + $0x30] sm:$0xf]
    %v108 = vld [vmem:[#allocation5 + $0x34] sm:$0xf]
    %v109 = vld [vmem:[#allocation5 + $0x38] sm:$0xf]
    %v110 = vld [vmem:[#allocation5 + $0x3c] sm:$0xf]
    %v111 = vld [vmem:[%s2] sm:$0x1]
    %v113 = vperm.slane %v111, 0
    %v131 = vunpack.c.l.b16 %v95
    %v132 = vunpack.c.l.b16 %v96
    %v133 = vunpack.c.l.b16 %v97
    %v134 = vunpack.c.l.b16 %v98
    %v135 = vunpack.c.l.b16 %v99
    %v136 = vunpack.c.l.b16 %v100
    %v137 = vunpack.c.l.b16 %v101
    %v138 = vunpack.c.l.b16 %v102
    %v139 = vunpack.c.l.b16 %v103
    %v140 = vunpack.c.l.b16 %v104
    %v141 = vunpack.c.l.b16 %v105
    %v142 = vunpack.c.l.b16 %v106
    %v143 = vunpack.c.l.b16 %v107
    %v144 = vunpack.c.l.b16 %v108
    %v145 = vunpack.c.l.b16 %v109
    %v146 = vunpack.c.l.b16 %v110
    %v147 = vpack.c.b16 %v132, %v131
    %v148 = vpack.c.b16 %v134, %v133
    %v149 = vpack.c.b16 %v136, %v135
    %v150 = vpack.c.b16 %v138, %v137
    %v151 = vpack.c.b16 %v140, %v139
    %v152 = vpack.c.b16 %v142, %v141
    %v153 = vpack.c.b16 %v144, %v143
    %v154 = vpack.c.b16 %v146, %v145
    %163 = vmatpush.bf16.msra.mxu0 %v154
    %164 = vmatpush.bf16.msra.mxu0 %v153
    %165 = vmatpush.bf16.msra.mxu0 %v152
    %166 = vmatpush.bf16.msra.mxu0 %v151
    %167 = vmatpush.bf16.msra.mxu0 %v150
    %168 = vmatpush.bf16.msra.mxu0 %v149
    %169 = vmatpush.bf16.msra.mxu0 %v148
    %170 = vmatpush.bf16.msra.mxu0 %v147
    %171 = vmatmul.bf16.gmra.mxu0 %v93
    %v172 = vpop.f32.mrf.mxu0
    %v173 = vadd.f32 %v113, %v172
    %v174 = vpop.f32.mrf.mxu0
    %v175 = vadd.f32 %v113, %v174
    %176 = vmatmul.bf16.gmra.mxu0 %v94
    %v177 = vpop.f32.mrf.mxu0
    %v178 = vadd.f32 %v113, %v177
    %v179 = vpop.f32.mrf.mxu0
    %180 = vdwg.mxu0
    %v181 = vmax.f32 %v173, 0.0
    %v182 = vmax.f32 %v175, 0.0
    %v183 = vmax.f32 %v178, 0.0
    %v184 = vpack.c.bf16 %v182, %v181
    %v185 = vpack.c.bf16 %v183, %v183
    %v186 = vld [vmem:[#allocation7] sm:$0xf]
    %v187 = vld [vmem:[#allocation7 + $0x4] sm:$0xf]
    %v188 = vld [vmem:[#allocation7 + $0x8] sm:$0xf]
    %v189 = vld [vmem:[#allocation7 + $0xc] sm:$0xf]
    %v190 = vld [vmem:[#allocation7 + $0x10] sm:$0xf]
    %v191 = vld [vmem:[#allocation7 + $0x14] sm:$0xf]
    %v192 = vld [vmem:[#allocation7 + $0x18] sm:$0xf]
    %v193 = vld [vmem:[#allocation7 + $0x1c] sm:$0xf]
    %v194 = vld [vmem:[#allocation7 + $0x20] sm:$0xf]
    %v195 = vld [vmem:[#allocation7 + $0x24] sm:$0xf]
    %v196 = vld [vmem:[#allocation7 + $0x28] sm:$0xf]
    %v197 = vld [vmem:[#allocation7 + $0x2c] sm:$0xf]
    %v198 = vld [vmem:[#allocation7 + $0x30] sm:$0xf]
    %v199 = vld [vmem:[#allocation7 + $0x34] sm:$0xf]
    %v200 = vld [vmem:[#allocation7 + $0x38] sm:$0xf]
    %v201 = vld [vmem:[#allocation7 + $0x3c] sm:$0xf]
    %v202 = vld [vmem:[%s4] sm:$0x1]
    %v204 = vperm.slane %v202, 0
    %v222 = vunpack.c.l.b16 %v186
    %v223 = vunpack.c.l.b16 %v187
    %v224 = vunpack.c.l.b16 %v188
    %v225 = vunpack.c.l.b16 %v189
    %v226 = vunpack.c.l.b16 %v190
    %v227 = vunpack.c.l.b16 %v191
    %v228 = vunpack.c.l.b16 %v192
    %v229 = vunpack.c.l.b16 %v193
    %v230 = vunpack.c.l.b16 %v194
    %v231 = vunpack.c.l.b16 %v195
    %v232 = vunpack.c.l.b16 %v196
    %v233 = vunpack.c.l.b16 %v197
    %v234 = vunpack.c.l.b16 %v198
    %v235 = vunpack.c.l.b16 %v199
    %v236 = vunpack.c.l.b16 %v200
    %v237 = vunpack.c.l.b16 %v201
    %v238 = vpack.c.b16 %v223, %v222
    %v239 = vpack.c.b16 %v225, %v224
    %v240 = vpack.c.b16 %v227, %v226
    %v241 = vpack.c.b16 %v229, %v228
    %v242 = vpack.c.b16 %v231, %v230
    %v243 = vpack.c.b16 %v233, %v232
    %v244 = vpack.c.b16 %v235, %v234
    %v245 = vpack.c.b16 %v237, %v236
    %254 = vmatpush.bf16.msra.mxu0 %v245
    %255 = vmatpush.bf16.msra.mxu0 %v244
    %256 = vmatpush.bf16.msra.mxu0 %v243
    %257 = vmatpush.bf16.msra.mxu0 %v242
    %258 = vmatpush.bf16.msra.mxu0 %v241
    %259 = vmatpush.bf16.msra.mxu0 %v240
    %260 = vmatpush.bf16.msra.mxu0 %v239
    %261 = vmatpush.bf16.msra.mxu0 %v238
    %262 = vmatmul.bf16.gmra.mxu0 %v184
    %v263 = vpop.f32.mrf.mxu0
    %v264 = vadd.f32 %v204, %v263
    %v265 = vpop.f32.mrf.mxu0
    %v266 = vadd.f32 %v204, %v265
    %267 = vmatmul.bf16.gmra.mxu0 %v185
    %v268 = vpop.f32.mrf.mxu0
    %v269 = vadd.f32 %v204, %v268
    %v270 = vpop.f32.mrf.mxu0
    %271 = vdwg.mxu0
    %v272 = vmax.f32 %v264, 0.0
    %v273 = vmax.f32 %v266, 0.0
    %v274 = vmax.f32 %v269, 0.0
    %v275 = vpack.c.bf16 %v273, %v272
    %v276 = vpack.c.bf16 %v274, %v274
    %v277 = vld [vmem:[#allocation8] sm:$0xf]
    %v278 = vld [vmem:[#allocation8 + $0x4] sm:$0xf]
    %v279 = vld [vmem:[#allocation8 + $0x8] sm:$0xf]
    %v280 = vld [vmem:[#allocation8 + $0xc] sm:$0xf]
    %v281 = vld [vmem:[#allocation8 + $0x10] sm:$0xf]
    %v282 = vld [vmem:[#allocation8 + $0x14] sm:$0xf]
    %v283 = vld [vmem:[#allocation8 + $0x18] sm:$0xf]
    %v284 = vld [vmem:[#allocation8 + $0x1c] sm:$0xf]
    %v285 = vld [vmem:[#allocation8 + $0x20] sm:$0xf]
    %v286 = vld [vmem:[#allocation8 + $0x24] sm:$0xf]
    %v287 = vld [vmem:[#allocation8 + $0x28] sm:$0xf]
    %v288 = vld [vmem:[#allocation8 + $0x2c] sm:$0xf]
    %v289 = vld [vmem:[#allocation8 + $0x30] sm:$0xf]
    %v290 = vld [vmem:[#allocation8 + $0x34] sm:$0xf]
    %v291 = vld [vmem:[#allocation8 + $0x38] sm:$0xf]
    %v292 = vld [vmem:[#allocation8 + $0x3c] sm:$0xf]
    %v293 = vld [vmem:[%s6] sm:$0x1]
    %v295 = vperm.slane %v293, 0
    %v313 = vunpack.c.l.b16 %v277
    %v314 = vunpack.c.l.b16 %v278
    %v315 = vunpack.c.l.b16 %v279
    %v316 = vunpack.c.l.b16 %v280
    %v317 = vunpack.c.l.b16 %v281
    %v318 = vunpack.c.l.b16 %v282
    %v319 = vunpack.c.l.b16 %v283
    %v320 = vunpack.c.l.b16 %v284
    %v321 = vunpack.c.l.b16 %v285
    %v322 = vunpack.c.l.b16 %v286
    %v323 = vunpack.c.l.b16 %v287
    %v324 = vunpack.c.l.b16 %v288
    %v325 = vunpack.c.l.b16 %v289
    %v326 = vunpack.c.l.b16 %v290
    %v327 = vunpack.c.l.b16 %v291
    %v328 = vunpack.c.l.b16 %v292
    %v329 = vpack.c.b16 %v314, %v313
    %v330 = vpack.c.b16 %v316, %v315
    %v331 = vpack.c.b16 %v318, %v317
    %v332 = vpack.c.b16 %v320, %v319
    %v333 = vpack.c.b16 %v322, %v321
    %v334 = vpack.c.b16 %v324, %v323
    %v335 = vpack.c.b16 %v326, %v325
    %v336 = vpack.c.b16 %v328, %v327
    %345 = vmatpush.bf16.msra.mxu0 %v336
    %346 = vmatpush.bf16.msra.mxu0 %v335
    %347 = vmatpush.bf16.msra.mxu0 %v334
    %348 = vmatpush.bf16.msra.mxu0 %v333
    %349 = vmatpush.bf16.msra.mxu0 %v332
    %350 = vmatpush.bf16.msra.mxu0 %v331
    %351 = vmatpush.bf16.msra.mxu0 %v330
    %352 = vmatpush.bf16.msra.mxu0 %v329
    %353 = vmatmul.bf16.gmra.mxu0 %v275
    %v354 = vpop.f32.mrf.mxu0
    %v355 = vadd.f32 %v295, %v354
    %v356 = vpop.f32.mrf.mxu0
    %v357 = vadd.f32 %v295, %v356
    %358 = vmatmul.bf16.gmra.mxu0 %v276
    %v359 = vpop.f32.mrf.mxu0
    %v360 = vadd.f32 %v295, %v359
    %v361 = vpop.f32.mrf.mxu0
    %362 = vdwg.mxu0
    %363 = vst [vmem:[#allocation10] sm:$0xff] %v355
    %364 = vst [vmem:[#allocation10 + $0x8] sm:$0xff] %v357
    %365 = vst [vmem:[#allocation10 + $0x10] sm:$0xff] %v360
    // Predicated region
    $region46: #{tpu_custom_call.1} parent=1 // pred_check
      _
    $region47: #{tpu_custom_call.1} parent=1 // pred_check_branch
      %367 = sbr.rel (0) target = $region49
    $region48: #{tpu_custom_call.1} parent=1 // pred_region
      %369 = vsyncadd [#allocation4], 0
      %s370 = sshll.u32 [#allocation10], 4
      %s371 = int_to_ptr.vmem [resolvable:$true] %s370
      %s372 = sshll.u32 %s7, 4
      %s373 = int_to_ptr.hbm [resolvable:$true] %s372
      %378 = dma.vmem_to_hbm [thread:$0]  %s371, 384, %s373, [#allocation4], 128, 128, 8
    $region49: #{tpu_custom_call.1} parent=1 // pred_fallthru
      _
    // Predicated region
    $region50: #{tpu_custom_call.1} parent=1 // pred_check
      _
    $region51: #{tpu_custom_call.1} parent=1 // pred_check_branch
      %380 = sbr.rel (0) target = $region53
    $region52: #{tpu_custom_call.1} parent=1 // pred_region
      %382 = dma.done [#allocation4], 384
    $region53: #{tpu_custom_call.1} parent=1 // pred_fallthru
      _
    %383 = vsyncpa [#allocation3], 1
    %384 = vsyncpa [#allocation6], 1
    %385 = vsyncpa [#allocation9], 1
    %386 = vsyncpa [#allocation4], 1

</llo_original>
